<compile_context>
chip_gen: v5e
topology: v5e:2x2
jax: 0.10.0
libtpu: 0.0.40
codegen_flags: <defaults>
</compile_context>

<pallas_src>
import functools
import math

import numpy as np
import jax
import jax.numpy as jnp
from jax.experimental import pallas as pl
from jax.experimental.pallas import tpu as pltpu


def _round_up(x, m):
    return ((x + m - 1) // m) * m


# -----------------------------------------------------------------------------
# Kernel 1a: fused 1x1 conv (no bias) + GroupNorm(16, C) — per-batch grid
# -----------------------------------------------------------------------------
def conv_gn_fused_kernel(x_ref, w_ref, gamma_ref, beta_ref, gsel_ref, gselT_ref, o_ref,
                         *, hw, c_per_group, eps):
    # x_ref: (1, HW, Cin), w_ref: (Cin, Cout), gamma/beta: (1, Cout)
    # gsel: (Cout, G) one-hot channel->group, gselT: (G, Cout)
    x = x_ref[0]                                                      # (HW, Cin)
    y = jnp.dot(x, w_ref[...], preferred_element_type=jnp.float32)    # (HW, Cout)

    # Reduce over HW first (XLU slot), then project the tiny (2, Cout) stats to groups.
    colsum = jnp.sum(y, axis=0, keepdims=True)                        # (1, Cout)
    colsq = jnp.sum(y * y, axis=0, keepdims=True)                     # (1, Cout)
    n = float(hw * c_per_group)
    gstats = jnp.dot(jnp.concatenate([colsum, colsq], axis=0), gsel_ref[...],
                     preferred_element_type=jnp.float32)              # (2, G)
    mean_g = gstats[0:1] / n
    var_g = jnp.maximum(gstats[1:2] / n - mean_g * mean_g, 0.0)       # clamp cancellation
    mv_c = jnp.dot(jnp.concatenate([mean_g, var_g], axis=0), gselT_ref[...],
                   preferred_element_type=jnp.float32)                # (2, Cout)
    mean_c = mv_c[0:1]
    rstd_c = jax.lax.rsqrt(mv_c[1:2] + eps)

    scale = rstd_c * gamma_ref[...]
    shift = beta_ref[...] - mean_c * scale
    o_ref[0] = (y * scale + shift).astype(o_ref.dtype)


# -----------------------------------------------------------------------------
# Kernel 1b/1c: HW-tiled two-pass GroupNorm (pass 1: conv + stat accumulation;
#               pass 2: elementwise normalize + affine)
# -----------------------------------------------------------------------------
def conv_stats_kernel(x_ref, w_ref, gsel_ref, gselT_ref, y_ref, stats_ref,
                      *, hw_total, c_per_group, eps):
    t = pl.program_id(1)
    y = jnp.dot(x_ref[0], w_ref[...], preferred_element_type=jnp.float32)  # (thw, Cout)
    y_ref[0] = y.astype(y_ref.dtype)

    colsum = jnp.sum(y, axis=0, keepdims=True)                        # (1, Cout)
    colsq = jnp.sum(y * y, axis=0, keepdims=True)                     # (1, Cout)
    upd = jnp.concatenate([colsum, colsq], axis=0)                    # (2, Cout)

    @pl.when(t == 0)
    def _():
        stats_ref[0] = upd

    @pl.when(t != 0)
    def _():
        stats_ref[0] = stats_ref[0] + upd

    # Finalize: turn accumulated (sum, sumsq) into per-channel (mean, rstd).
    @pl.when(t == pl.num_programs(1) - 1)
    def _():
        s = stats_ref[0]                                              # (2, Cout)
        n = float(hw_total * c_per_group)
        gstats = jnp.dot(s, gsel_ref[...], preferred_element_type=jnp.float32)  # (2, G)
        mean_g = gstats[0:1] / n
        var_g = jnp.maximum(gstats[1:2] / n - mean_g * mean_g, 0.0)
        mv_c = jnp.dot(jnp.concatenate([mean_g, var_g], axis=0), gselT_ref[...],
                       preferred_element_type=jnp.float32)            # (2, Cout)
        mean_c = mv_c[0:1]
        rstd_c = jax.lax.rsqrt(mv_c[1:2] + eps)
        stats_ref[0] = jnp.concatenate([mean_c, rstd_c], axis=0)


def gn_apply_kernel(y_ref, stats_ref, gamma_ref, beta_ref, o_ref):
    s = stats_ref[0]                                                  # (2, Cout): mean, rstd
    mean_c = s[0:1, :]
    rstd_c = s[1:2, :]
    scale = rstd_c * gamma_ref[...]
    shift = beta_ref[...] - mean_c * scale
    o_ref[0] = (y_ref[0] * scale + shift).astype(o_ref.dtype)


def _auto_hw_tile(hw, cin, cout, vmem_budget_bytes=12 << 20):
    """Pick None (fused single-pass) if a full-HW slab fits a conservative VMEM budget
    (safe for v5e's 16 MiB scoped default); otherwise the largest divisor tile that fits."""
    def slab_bytes(t):
        # input tile + fp32 output tile, each double-buffered by the BlockSpec pipeline
        return 2 * 4 * t * (cin + cout)
    if slab_bytes(hw) <= vmem_budget_bytes:
        return None
    for cand in (8192, 4096, 2048, 1024, 512, 256, 128, 64, 32, 16, 8):
        if hw % cand == 0 and slab_bytes(cand) <= vmem_budget_bytes:
            return cand
    # TODO(synk): ragged HW (not divisible by 8) falls back to the fused path; raise
    # vmem_limit_bytes via CompilerParams if that ever overflows VMEM.
    return None


def conv1x1_groupnorm(x, w, gamma, beta, *, num_groups=16, eps=1e-5, hw_tile="auto"):
    """x: (B, HW, Cin); w: (Cin, Cout); gamma/beta: (Cout,) -> (B, HW, Cout)."""
    b, hw, cin = x.shape
    cout = w.shape[1]
    assert cout % num_groups == 0
    c_per_group = cout // num_groups

    if hw_tile == "auto":
        hw_tile = _auto_hw_tile(hw, cin, cout)

    # one-hot channel->group selection (static, built with numpy: no trace bloat)
    ch = np.arange(cout)
    gsel_np = (ch[:, None] // c_per_group == np.arange(num_groups)[None, :]).astype(np.float32)
    gsel = jnp.asarray(gsel_np)
    gselT = jnp.asarray(gsel_np.T)

    conv_flops = 2 * b * hw * cin * cout
    conv_bytes = 4 * (b * hw * cin + cin * cout + b * hw * cout)

    if hw_tile is None or hw_tile >= hw:
        # Fused single-pass path: full-HW per-batch block (preferred: no HBM round-trip
        # of the conv output, one launch).
        kernel = functools.partial(conv_gn_fused_kernel, hw=hw, c_per_group=c_per_group, eps=eps)
        return pl.pallas_call(
            kernel,
            out_shape=jax.ShapeDtypeStruct((b, hw, cout), jnp.float32),
            grid=(b,),
            in_specs=[
                pl.BlockSpec((1, hw, cin), lambda i: (i, 0, 0)),
                pl.BlockSpec((cin, cout), lambda i: (0, 0)),
                pl.BlockSpec((1, cout), lambda i: (0, 0)),
                pl.BlockSpec((1, cout), lambda i: (0, 0)),
                pl.BlockSpec((cout, num_groups), lambda i: (0, 0)),
                pl.BlockSpec((num_groups, cout), lambda i: (0, 0)),
            ],
            out_specs=pl.BlockSpec((1, hw, cout), lambda i: (i, 0, 0)),
            compiler_params=pltpu.CompilerParams(dimension_semantics=("parallel",)),
            cost_estimate=pl.CostEstimate(flops=conv_flops, transcendentals=0,
                                          bytes_accessed=conv_bytes),
        )(x, w, gamma[None, :], beta[None, :], gsel, gselT)

    # Two-pass HW-tiled path (bounded VMEM; extra grid axis for megacore sharding).
    # TODO(synk): pad HW to a multiple of hw_tile if a ragged spatial size is ever needed.
    assert hw % hw_tile == 0 and hw_tile % 8 == 0
    n_t = hw // hw_tile

    kernel_a = functools.partial(conv_stats_kernel, hw_total=hw, c_per_group=c_per_group, eps=eps)
    y, stats = pl.pallas_call(
        kernel_a,
        out_shape=(jax.ShapeDtypeStruct((b, hw, cout), jnp.float32),
                   jax.ShapeDtypeStruct((b, 2, cout), jnp.float32)),
        grid=(b, n_t),
        in_specs=[
            pl.BlockSpec((1, hw_tile, cin), lambda i, t: (i, t, 0)),
            pl.BlockSpec((cin, cout), lambda i, t: (0, 0)),
            pl.BlockSpec((cout, num_groups), lambda i, t: (0, 0)),
            pl.BlockSpec((num_groups, cout), lambda i, t: (0, 0)),
        ],
        out_specs=(pl.BlockSpec((1, hw_tile, cout), lambda i, t: (i, t, 0)),
                   pl.BlockSpec((1, 2, cout), lambda i, t: (i, 0, 0))),
        compiler_params=pltpu.CompilerParams(dimension_semantics=("parallel", "arbitrary")),
        cost_estimate=pl.CostEstimate(flops=conv_flops, transcendentals=0,
                                      bytes_accessed=conv_bytes),
    )(x, w, gsel, gselT)

    return pl.pallas_call(
        gn_apply_kernel,
        out_shape=jax.ShapeDtypeStruct((b, hw, cout), jnp.float32),
        grid=(b, n_t),
        in_specs=[
            pl.BlockSpec((1, hw_tile, cout), lambda i, t: (i, t, 0)),
            pl.BlockSpec((1, 2, cout), lambda i, t: (i, 0, 0)),
            pl.BlockSpec((1, cout), lambda i, t: (0, 0)),
            pl.BlockSpec((1, cout), lambda i, t: (0, 0)),
        ],
        out_specs=pl.BlockSpec((1, hw_tile, cout), lambda i, t: (i, t, 0)),
        compiler_params=pltpu.CompilerParams(dimension_semantics=("parallel", "parallel")),
        cost_estimate=pl.CostEstimate(flops=2 * b * hw * cout, transcendentals=0,
                                      bytes_accessed=4 * (2 * b * hw * cout + 2 * b * cout)),
    )(y, stats, gamma[None, :], beta[None, :])


# -----------------------------------------------------------------------------
# Kernel 2: fused NerfPositionalEncoding (lin_sine) + corr MLP head + uncertainty MLP head
#   encoding: out[:, 2j+k]      = sin((j+1)*pi*q[:, k])           (sin half)
#             out[:, 2D+2j+k]   = cos((j+1)*pi*q[:, k])           (cos half, as sin(.+pi/2))
#   heads   : 3-layer MLPs (Linear-ReLU-Linear-ReLU-Linear), sigmoid on the uncertainty head
# -----------------------------------------------------------------------------
def query_heads_kernel(q_ref, mixx_ref, mixy_ref, phoff_ref,
                       cw1_ref, cb1_ref, cw2_ref, cb2_ref, cw3_ref, cb3_ref,
                       uw1_ref, ub1_ref, uw2_ref, ub2_ref, uw3_ref, ub3_ref,
                       enc_ref, corr_ref, unc_ref):
    q = q_ref[...]                                                    # (tm, 2)
    qx = q[:, 0:1]
    qy = q[:, 1:2]
    # VPU phase (no K=2 MXU matmul); cos half folded into sin via +pi/2 offset so the
    # whole encoding is produced with a single dense store.
    phase = qx * mixx_ref[...] + qy * mixy_ref[...] + phoff_ref[...]  # (tm, 4D)
    enc = jnp.sin(phase)
    enc_ref[...] = enc.astype(enc_ref.dtype)

    def mlp3(w1, b1, w2, b2, w3, b3):
        h = jnp.maximum(jnp.dot(enc, w1, preferred_element_type=jnp.float32) + b1, 0.0)
        h = jnp.maximum(jnp.dot(h, w2, preferred_element_type=jnp.float32) + b2, 0.0)
        return jnp.dot(h, w3, preferred_element_type=jnp.float32) + b3

    # Heads are kept as separate matmuls (packing them block-diagonally would double the
    # layer-2 MXU FLOPs at realistic hidden sizes); the shared `enc` is reused from vregs.
    corr = mlp3(cw1_ref[...], cb1_ref[...], cw2_ref[...], cb2_ref[...],
                cw3_ref[...], cb3_ref[...])
    unc = jax.nn.sigmoid(mlp3(uw1_ref[...], ub1_ref[...], uw2_ref[...], ub2_ref[...],
                              uw3_ref[...], ub3_ref[...]))
    corr_ref[...] = corr.astype(corr_ref.dtype)
    unc_ref[...] = unc.astype(unc_ref.dtype)


def query_and_heads(q, depth, corr_params, unc_params, *, hidden):
    """q: (M, 2) -> (q_enc (M, 4*depth), corrs (M, 2), uncertainty (M, 1))."""
    m = q.shape[0]
    enc_dim = 4 * depth
    assert enc_dim == hidden

    # static phase tables, built in numpy (no per-call trace bloat)
    freqs = np.pi * np.arange(1, depth + 1, dtype=np.float64)
    mx = np.zeros(2 * depth, np.float64)
    my = np.zeros(2 * depth, np.float64)
    mx[0::2] = freqs
    my[1::2] = freqs
    mixx = np.concatenate([mx, mx])[None, :].astype(np.float32)       # (1, 4D)
    mixy = np.concatenate([my, my])[None, :].astype(np.float32)
    phoff = np.concatenate([np.zeros(2 * depth), np.full(2 * depth, np.pi / 2.0)]
                           )[None, :].astype(np.float32)

    dout_c = corr_params["w3"].shape[1]
    dout_u = unc_params["w3"].shape[1]

    # row-tiled grid (parallel) so large query counts shard across cores; 512-row tiles
    # amortize the per-step grid overhead while staying well inside VMEM; pad to the tile.
    tm = min(512, _round_up(max(m, 8), 8))
    m_pad = _round_up(m, tm)
    q_pad = q if m_pad == m else jnp.pad(q, ((0, m_pad - m), (0, 0)))
    grid = (m_pad // tm,)

    full = lambda i: (0, 0)
    row = lambda i: (i, 0)

    flops = 2 * m_pad * (4 * hidden * hidden + hidden * (dout_c + dout_u))
    bytes_accessed = 4 * (m_pad * (2 + enc_dim + dout_c + dout_u)
                          + 4 * hidden * hidden + hidden * (dout_c + dout_u) + 3 * enc_dim)

    enc, corr, unc = pl.pallas_call(
        query_heads_kernel,
        out_shape=(jax.ShapeDtypeStruct((m_pad, enc_dim), jnp.float32),
                   jax.ShapeDtypeStruct((m_pad, dout_c), jnp.float32),
                   jax.ShapeDtypeStruct((m_pad, dout_u), jnp.float32)),
        grid=grid,
        in_specs=[
            pl.BlockSpec((tm, 2), row),
            pl.BlockSpec((1, enc_dim), full),
            pl.BlockSpec((1, enc_dim), full),
            pl.BlockSpec((1, enc_dim), full),
            pl.BlockSpec((hidden, hidden), full),
            pl.BlockSpec((1, hidden), full),
            pl.BlockSpec((hidden, hidden), full),
            pl.BlockSpec((1, hidden), full),
            pl.BlockSpec((hidden, dout_c), full),
            pl.BlockSpec((1, dout_c), full),
            pl.BlockSpec((hidden, hidden), full),
            pl.BlockSpec((1, hidden), full),
            pl.BlockSpec((hidden, hidden), full),
            pl.BlockSpec((1, hidden), full),
            pl.BlockSpec((hidden, dout_u), full),
            pl.BlockSpec((1, dout_u), full),
        ],
        out_specs=(pl.BlockSpec((tm, enc_dim), row),
                   pl.BlockSpec((tm, dout_c), row),
                   pl.BlockSpec((tm, dout_u), row)),
        compiler_params=pltpu.CompilerParams(dimension_semantics=("parallel",)),
        cost_estimate=pl.CostEstimate(flops=flops,
                                      transcendentals=m_pad * (enc_dim + 2),
                                      bytes_accessed=bytes_accessed),
    )(q_pad, jnp.asarray(mixx), jnp.asarray(mixy), jnp.asarray(phoff),
      corr_params["w1"], corr_params["b1"][None, :],
      corr_params["w2"], corr_params["b2"][None, :],
      corr_params["w3"], corr_params["b3"][None, :],
      unc_params["w1"], unc_params["b1"][None, :],
      unc_params["w2"], unc_params["b2"][None, :],
      unc_params["w3"], unc_params["b3"][None, :])

    if m_pad != m:
        enc, corr, unc = enc[:m], corr[:m], unc[:m]
    return enc, corr, unc


# -----------------------------------------------------------------------------
# Parameter init (deterministic, synthetic)
# -----------------------------------------------------------------------------
def init_linear(key, din, dout):
    kw, kb = jax.random.split(key)
    bound = 1.0 / math.sqrt(din)
    w = jax.random.uniform(kw, (din, dout), jnp.float32, -bound, bound)
    b = jax.random.uniform(kb, (dout,), jnp.float32, -bound, bound)
    return w, b


def init_mlp(key, din, dhid, dout):
    k1, k2, k3 = jax.random.split(key, 3)
    w1, b1 = init_linear(k1, din, dhid)
    w2, b2 = init_linear(k2, dhid, dhid)
    w3, b3 = init_linear(k3, dhid, dout)
    return dict(w1=w1, b1=b1, w2=w2, b2=b2, w3=w3, b3=b3)


# -----------------------------------------------------------------------------
# EOTR coarse forward (forward_coarse analogue, coarse_ecotr compute)
# -----------------------------------------------------------------------------
def eotr_coarse_forward(coarse_src_nchw, queries, params, *, hidden, hw_tile="auto"):
    B, Cin, H, W = coarse_src_nchw.shape
    _, Q, _ = queries.shape

    # --- coarse_input_proj: 1x1 conv + GroupNorm(16, hidden) ----------------
    x = jnp.transpose(coarse_src_nchw, (0, 2, 3, 1)).reshape(B, H * W, Cin)   # NCHW -> (B,HW,Cin)
    proj = conv1x1_groupnorm(x, params["conv_w"], params["gn_gamma"], params["gn_beta"],
                             num_groups=16, hw_tile=hw_tile)                  # (B, HW, hidden)

    # --- coarse_query_proj + corr/uncertainty heads (single fused kernel) ---
    # TODO(synk): backbone + coarse_transformer are externally supplied modules with no
    # in-module definition; the heads are applied to the encoded queries, which serve as a
    # shape-consistent stand-in for coarse_hs.
    depth = hidden // 4
    q_flat = queries.reshape(-1, 2)                                           # (B*Q, 2)
    q_enc, corrs, unc = query_and_heads(q_flat, depth, params["corr_mlp"], params["unc_mlp"],
                                        hidden=hidden)
    coarse_queries = q_enc.reshape(B, Q, hidden).transpose(1, 0, 2)           # (Q, B, hidden)
    corrs = corrs.reshape(B, Q, 2)
    unc = unc.reshape(B, Q, 1)

    return {
        "coarse_queries": coarse_queries,     # (Q, B, hidden)
        "coarse_corrs": corrs,                # (B, Q, 2)
        "coarse_uncertainty": unc,            # (B, Q, 1)
        "coarse_proj_features": proj,         # (B, HW, hidden)  (input to the transformer)
    }


# -----------------------------------------------------------------------------
# Pure-JAX references (correctness check)
# -----------------------------------------------------------------------------
def _ref_dot(a, b):
    return jnp.dot(a, b, precision=jax.lax.Precision.HIGHEST)


def ref_conv_gn(x, w, gamma, beta, num_groups=16, eps=1e-5):
    b, hw, cin = x.shape
    cout = w.shape[1]
    y = _ref_dot(x.reshape(-1, cin), w).reshape(b, hw, cout)
    yg = y.reshape(b, hw, num_groups, cout // num_groups)
    mean = jnp.mean(yg, axis=(1, 3), keepdims=True)
    var = jnp.mean((yg - mean) ** 2, axis=(1, 3), keepdims=True)
    yn = ((yg - mean) * jax.lax.rsqrt(var + eps)).reshape(b, hw, cout)
    return yn * gamma + beta


def ref_nerf(q, depth):
    outs = [jnp.sin((i + 1) * math.pi * q) for i in range(depth)]
    outs += [jnp.cos((i + 1) * math.pi * q) for i in range(depth)]
    return jnp.concatenate(outs, axis=-1)


def ref_mlp(x, p, sigmoid=False):
    h = jnp.maximum(_ref_dot(x, p["w1"]) + p["b1"], 0.0)
    h = jnp.maximum(_ref_dot(h, p["w2"]) + p["b2"], 0.0)
    y = _ref_dot(h, p["w3"]) + p["b3"]
    return jax.nn.sigmoid(y) if sigmoid else y


def _check(a, b, name, rtol=1e-3, atol=1e-3):
    if not bool(jnp.allclose(a, b, rtol=rtol, atol=atol)):
        err = float(jnp.max(jnp.abs(a - b)))
        raise AssertionError(f"{name}: mismatch vs reference (max abs err {err})")


if __name__ == "__main__":
    # small shapes: batch=2, coarse feature channels=32(=hidden), spatial=8x8, queries=8
    B, Q = 2, 8
    HIDDEN = 32            # hidden_dims[-1]; divisible by 16 (GroupNorm) and by 4 (Nerf depth)
    CIN = HIDDEN           # conv in-channels == hidden_dims[-1] per __init__
    H = W = 8

    key = jax.random.PRNGKey(0)
    k_feat, k_query, k_conv, k_gn, k_corr, k_unc = jax.random.split(key, 6)

    coarse_src = jax.random.normal(k_feat, (B, CIN, H, W), jnp.float32)   # NCHW (PyTorch layout)
    queries = jax.random.uniform(k_query, (B, Q, 2), jnp.float32)

    kg1, kg2 = jax.random.split(k_gn)
    params = dict(
        conv_w=jax.random.normal(k_conv, (CIN, HIDDEN), jnp.float32) * (1.0 / math.sqrt(CIN)),
        gn_gamma=1.0 + 0.1 * jax.random.normal(kg1, (HIDDEN,), jnp.float32),
        gn_beta=0.1 * jax.random.normal(kg2, (HIDDEN,), jnp.float32),
        corr_mlp=init_mlp(k_corr, HIDDEN, HIDDEN, 2),
        unc_mlp=init_mlp(k_unc, HIDDEN, HIDDEN, 1),
    )

    # auto path (fused GroupNorm at this size)
    out = eotr_coarse_forward(coarse_src, queries, params, hidden=HIDDEN)
    jax.block_until_ready(out)

    # HW-tiled two-pass GroupNorm path (the large-HW / small-VMEM variant) — exercised too
    out_tiled = eotr_coarse_forward(coarse_src, queries, params, hidden=HIDDEN, hw_tile=32)
    jax.block_until_ready(out_tiled)

    # --- shape checks --------------------------------------------------------
    assert out["coarse_queries"].shape == (Q, B, HIDDEN)
    assert out["coarse_corrs"].shape == (B, Q, 2)
    assert out["coarse_uncertainty"].shape == (B, Q, 1)
    assert out["coarse_proj_features"].shape == (B, H * W, HIDDEN)

    # --- numerics vs pure-JAX reference --------------------------------------
    x_flat = jnp.transpose(coarse_src, (0, 2, 3, 1)).reshape(B, H * W, CIN)
    proj_ref = ref_conv_gn(x_flat, params["conv_w"], params["gn_gamma"], params["gn_beta"])
    q_enc_ref = ref_nerf(queries.reshape(-1, 2), HIDDEN // 4)
    corr_ref = ref_mlp(q_enc_ref, params["corr_mlp"]).reshape(B, Q, 2)
    unc_ref = ref_mlp(q_enc_ref, params["unc_mlp"], sigmoid=True).reshape(B, Q, 1)
    cq_ref = q_enc_ref.reshape(B, Q, HIDDEN).transpose(1, 0, 2)

    _check(out["coarse_proj_features"], proj_ref, "proj (fused)")
    _check(out_tiled["coarse_proj_features"], proj_ref, "proj (hw-tiled)")
    _check(out["coarse_queries"], cq_ref, "coarse_queries")
    _check(out["coarse_corrs"], corr_ref, "coarse_corrs")
    _check(out["coarse_uncertainty"], unc_ref, "coarse_uncertainty")

    print("KERNEL_OK")
</pallas_src>

<mosaic_0001>
module attributes {stable_mosaic.version = 11 : i64} {
  func.func @conv_gn_fused_kernel(%arg0: i32, %arg1: memref<1x64x32xf32, #tpu.memory_space<vmem>>, %arg2: memref<32x32xf32, #tpu.memory_space<vmem>>, %arg3: memref<1x32xf32, #tpu.memory_space<vmem>>, %arg4: memref<1x32xf32, #tpu.memory_space<vmem>>, %arg5: memref<32x16xf32, #tpu.memory_space<vmem>>, %arg6: memref<16x32xf32, #tpu.memory_space<vmem>>, %arg7: memref<1x64x32xf32, #tpu.memory_space<vmem>>) attributes {dimension_semantics = [#tpu.dimension_semantics<parallel>], iteration_bounds = array<i64: 2>, scalar_prefetch = 0 : i64, scratch_operands = 0 : i64, tpu.core_type = #tpu.core_type<tc>, window_params = [{transform_indices = @transform_0, window_bounds = array<i64: 1, 64, 32>}, {pipeline_mode = #tpu.pipeline_mode<synchronous>, transform_indices = @transform_1, window_bounds = array<i64: 32, 32>}, {pipeline_mode = #tpu.pipeline_mode<synchronous>, transform_indices = @transform_2, window_bounds = array<i64: 1, 32>}, {pipeline_mode = #tpu.pipeline_mode<synchronous>, transform_indices = @transform_3, window_bounds = array<i64: 1, 32>}, {pipeline_mode = #tpu.pipeline_mode<synchronous>, transform_indices = @transform_4, window_bounds = array<i64: 32, 16>}, {pipeline_mode = #tpu.pipeline_mode<synchronous>, transform_indices = @transform_5, window_bounds = array<i64: 16, 32>}, {transform_indices = @transform_6, window_bounds = array<i64: 1, 64, 32>}]} {
    %c0 = arith.constant 0 : index
    %c0_0 = arith.constant 0 : index
    %c0_1 = arith.constant 0 : index
    %0 = vector.load %arg1[%c0, %c0_0, %c0_1] : memref<1x64x32xf32, #tpu.memory_space<vmem>>, vector<1x64x32xf32>
    %1 = vector.shape_cast %0 : vector<1x64x32xf32> to vector<64x32xf32>
    %c0_2 = arith.constant 0 : index
    %c0_3 = arith.constant 0 : index
    %2 = vector.load %arg2[%c0_2, %c0_3] : memref<32x32xf32, #tpu.memory_space<vmem>>, vector<32x32xf32>
    %cst = arith.constant dense<0.000000e+00> : vector<64x32xf32>
    %3 = tpu.matmul %1, %2, %cst {dimension_numbers = #tpu.dot_dimension_numbers<[1], [0], [0], [1], [0, 0, 1, 1], [], []>} : vector<64x32xf32>, vector<32x32xf32>, vector<64x32xf32> -> vector<64x32xf32>
    %cst_4 = arith.constant dense<0.000000e+00> : vector<32xf32>
    %4 = vector.multi_reduction <add>, %3, %cst_4 [0] : vector<64x32xf32> to vector<32xf32>
    %5 = vector.shape_cast %4 : vector<32xf32> to vector<1x32xf32>
    %6 = arith.mulf %3, %3 : vector<64x32xf32>
    %cst_5 = arith.constant dense<0.000000e+00> : vector<32xf32>
    %7 = vector.multi_reduction <add>, %6, %cst_5 [0] : vector<64x32xf32> to vector<32xf32>
    %8 = vector.shape_cast %7 : vector<32xf32> to vector<1x32xf32>
    %9 = tpu.concatenate %5, %8 in 0 : vector<1x32xf32>, vector<1x32xf32> -> vector<2x32xf32>
    %c0_6 = arith.constant 0 : index
    %c0_7 = arith.constant 0 : index
    %10 = vector.load %arg5[%c0_6, %c0_7] : memref<32x16xf32, #tpu.memory_space<vmem>>, vector<32x16xf32>
    %cst_8 = arith.constant dense<0.000000e+00> : vector<2x16xf32>
    %11 = tpu.matmul %9, %10, %cst_8 {dimension_numbers = #tpu.dot_dimension_numbers<[1], [0], [0], [1], [0, 0, 1, 1], [], []>} : vector<2x32xf32>, vector<32x16xf32>, vector<2x16xf32> -> vector<2x16xf32>
    %12 = vector.extract_strided_slice %11 {offsets = [0, 0], sizes = [1, 16], strides = [1, 1]} : vector<2x16xf32> to vector<1x16xf32>
    %cst_9 = arith.constant 1.280000e+02 : f32
    %13 = vector.broadcast %cst_9 : f32 to vector<1x16xf32>
    %14 = arith.divf %12, %13 : vector<1x16xf32>
    %15 = vector.extract_strided_slice %11 {offsets = [1, 0], sizes = [1, 16], strides = [1, 1]} : vector<2x16xf32> to vector<1x16xf32>
    %cst_10 = arith.constant 1.280000e+02 : f32
    %16 = vector.broadcast %cst_10 : f32 to vector<1x16xf32>
    %17 = arith.divf %15, %16 : vector<1x16xf32>
    %18 = arith.mulf %14, %14 : vector<1x16xf32>
    %19 = arith.subf %17, %18 : vector<1x16xf32>
    %cst_11 = arith.constant 0.000000e+00 : f32
    %20 = vector.broadcast %cst_11 : f32 to vector<1x16xf32>
    %21 = arith.maximumf %19, %20 : vector<1x16xf32>
    %22 = tpu.concatenate %14, %21 in 0 : vector<1x16xf32>, vector<1x16xf32> -> vector<2x16xf32>
    %c0_12 = arith.constant 0 : index
    %c0_13 = arith.constant 0 : index
    %23 = vector.load %arg6[%c0_12, %c0_13] : memref<16x32xf32, #tpu.memory_space<vmem>>, vector<16x32xf32>
    %cst_14 = arith.constant dense<0.000000e+00> : vector<2x32xf32>
    %24 = tpu.matmul %22, %23, %cst_14 {dimension_numbers = #tpu.dot_dimension_numbers<[1], [0], [0], [1], [0, 0, 1, 1], [], []>} : vector<2x16xf32>, vector<16x32xf32>, vector<2x32xf32> -> vector<2x32xf32>
    %25 = vector.extract_strided_slice %24 {offsets = [0, 0], sizes = [1, 32], strides = [1, 1]} : vector<2x32xf32> to vector<1x32xf32>
    %26 = vector.extract_strided_slice %24 {offsets = [1, 0], sizes = [1, 32], strides = [1, 1]} : vector<2x32xf32> to vector<1x32xf32>
    %cst_15 = arith.constant 9.99999974E-6 : f32
    %27 = vector.broadcast %cst_15 : f32 to vector<1x32xf32>
    %28 = arith.addf %26, %27 : vector<1x32xf32>
    %29 = math.rsqrt %28 : vector<1x32xf32>
    %c0_16 = arith.constant 0 : index
    %c0_17 = arith.constant 0 : index
    %30 = vector.load %arg3[%c0_16, %c0_17] : memref<1x32xf32, #tpu.memory_space<vmem>>, vector<1x32xf32>
    %31 = arith.mulf %29, %30 : vector<1x32xf32>
    %c0_18 = arith.constant 0 : index
    %c0_19 = arith.constant 0 : index
    %32 = vector.load %arg4[%c0_18, %c0_19] : memref<1x32xf32, #tpu.memory_space<vmem>>, vector<1x32xf32>
    %33 = arith.mulf %25, %31 : vector<1x32xf32>
    %34 = arith.subf %32, %33 : vector<1x32xf32>
    %35 = vector.broadcast %31 : vector<1x32xf32> to vector<64x32xf32>
    %36 = arith.mulf %3, %35 : vector<64x32xf32>
    %37 = vector.broadcast %34 : vector<1x32xf32> to vector<64x32xf32>
    %38 = arith.addf %36, %37 : vector<64x32xf32>
    %c0_20 = arith.constant 0 : index
    %c0_21 = arith.constant 0 : index
    %c0_22 = arith.constant 0 : index
    %39 = vector.load %arg7[%c0_20, %c0_21, %c0_22] : memref<1x64x32xf32, #tpu.memory_space<vmem>>, vector<1x64x32xf32>
    %40 = vector.shape_cast %39 : vector<1x64x32xf32> to vector<64x32xf32>
    %41 = vector.shape_cast %38 : vector<64x32xf32> to vector<1x64x32xf32>
    tpu.vector_store %arg7[%c0_20, %c0_21, %c0_22], %41 {strides = array<i32>} : memref<1x64x32xf32, #tpu.memory_space<vmem>>, vector<1x64x32xf32>,
    return
  }
  func.func @transform_0(%arg0: i32) -> (i32, i32, i32) {
    %c0_i32 = arith.constant 0 : i32
    %c0_i32_0 = arith.constant 0 : i32
    %c0_i32_1 = arith.constant 0 : i32
    return %arg0, %c0_i32, %c0_i32_0 : i32, i32, i32
  }
  func.func @transform_1(%arg0: i32) -> (i32, i32) {
    %c0_i32 = arith.constant 0 : i32
    %c0_i32_0 = arith.constant 0 : i32
    %c0_i32_1 = arith.constant 0 : i32
    return %c0_i32, %c0_i32_0 : i32, i32
  }
  func.func @transform_2(%arg0: i32) -> (i32, i32) {
    %c0_i32 = arith.constant 0 : i32
    %c0_i32_0 = arith.constant 0 : i32
    %c0_i32_1 = arith.constant 0 : i32
    return %c0_i32, %c0_i32_0 : i32, i32
  }
  func.func @transform_3(%arg0: i32) -> (i32, i32) {
    %c0_i32 = arith.constant 0 : i32
    %c0_i32_0 = arith.constant 0 : i32
    %c0_i32_1 = arith.constant 0 : i32
    return %c0_i32, %c0_i32_0 : i32, i32
  }
  func.func @transform_4(%arg0: i32) -> (i32, i32) {
    %c0_i32 = arith.constant 0 : i32
    %c0_i32_0 = arith.constant 0 : i32
    %c0_i32_1 = arith.constant 0 : i32
    return %c0_i32, %c0_i32_0 : i32, i32
  }
  func.func @transform_5(%arg0: i32) -> (i32, i32) {
    %c0_i32 = arith.constant 0 : i32
    %c0_i32_0 = arith.constant 0 : i32
    %c0_i32_1 = arith.constant 0 : i32
    return %c0_i32, %c0_i32_0 : i32, i32
  }
  func.func @transform_6(%arg0: i32) -> (i32, i32, i32) {
    %c0_i32 = arith.constant 0 : i32
    %c0_i32_0 = arith.constant 0 : i32
    %c0_i32_1 = arith.constant 0 : i32
    return %arg0, %c0_i32, %c0_i32_0 : i32, i32, i32
  }
}

</mosaic_0001>

<llo_original>
// kernel: tpu_custom_call.1
$region0: #{tpu_custom_call.1}
  #allocation0 [shape = 'u32[]', space=smem, size = 0x4, offset = 0x4, fixed_abs, tag = 'smem constant byte address 0x4 - core index']
  #allocation1 [shape = 'u32[72,128]{1,0:T(1,128)}', space=vmem, size = 0x9000, scoped, tag = 'internal scratch']
  %s0 = inlined_call_operand.vmem [shape: f32[2,64,32], index: 0, kind: input, shape index: {}]
  %s1 = inlined_call_operand.vmem [shape: f32[32,32], index: 1, kind: input, shape index: {}]
  %s2 = inlined_call_operand.vmem [shape: f32[1,32], index: 2, kind: input, shape index: {}]
  %s3 = inlined_call_operand.vmem [shape: f32[1,32], index: 3, kind: input, shape index: {}]
  %s4 = inlined_call_operand.vmem [shape: f32[32,16], index: 4, kind: input, shape index: {}]
  %s5 = inlined_call_operand.vmem [shape: f32[16,32], index: 5, kind: input, shape index: {}]
  %s6 = inlined_call_operand.vmem [shape: f32[2,64,32], index: 6, kind: output, shape index: {}]
  %s7 = sld [smem:[#allocation0]]
  $region57: #{tpu_custom_call.1} parent=0
    _
  %s9 = ssub.s32 1, %s7
  %s10 = scalar_select 0, %s9, %s7
  loop: start=0, step=1, limit=4
  $region2: #{tpu_custom_call.1} parent=0 // loop_pre_header
    _
  $region3: #{tpu_custom_call.1} parent=0 // loop_header
    %s12 = sphi 0, %s16
    %p13 = scmp.ge.s32.totalorder %s12, 4
    %s22 = sphi 0, %s24
    %s25 = sphi 0, %s22
    %s26 = sphi 0, %s25
    %s42 = sphi 0, %s26
    %s46 = sphi 0, %s46
    %s48 = sphi 0, %s46
    %s49 = sphi 0, %s48
    %s63 = sphi 0, %s49
    %s67 = sphi 0, %s67
    %s69 = sphi 0, %s67
    %s70 = sphi 0, %s69
    %s84 = sphi 0, %s70
    %s88 = sphi 0, %s88
    %s90 = sphi 0, %s88
    %s91 = sphi 0, %s90
    %s105 = sphi 0, %s91
    %s109 = sphi 0, %s109
    %s111 = sphi 0, %s109
    %s112 = sphi 0, %s111
    %s126 = sphi 0, %s112
    %s130 = sphi 0, %s130
    %s132 = sphi 0, %s130
    %s133 = sphi 0, %s132
    %s147 = sphi 0, %s133
    %s153 = sphi 0, %s155
    %s156 = sphi 0, %s153
    %s157 = sphi 0, %s156
    %s173 = sphi 0, %s157
  $region4: #{tpu_custom_call.1} parent=0 // loop_header_branch
    %15 = sbr.rel (%p13) target = $region8
  $region5: #{tpu_custom_call.1} parent=0 // loop_body
    %s17 = ssub.s32 %s12, 1
    %s18 = ssub.s32 %s12, 2
    %s19 = sadd.s32 %s12, 1
    %s20 = ssub.s32 %s12, %s19
    %p21 = scmp.eq.s32.totalorder %s20, 0
    %s23 = sadd.s32 %s22, 1
    %s24 = scalar_select %p21, %s22, %s23
    %p27 = pneg %p21
    %p28 = scmp.eq.s32.totalorder %s12, 1
    %p29 = por %p27, %p28
    %p30 = scmp.ne.s32.totalorder %s22, %s25
    %p31 = scmp.eq.s32.totalorder %s12, 0
    %p32 = por %p30, %p31
    %p33 = scmp.ne.s32.totalorder %s22, %s25
    %p34 = scmp.eq.s32.totalorder %s17, 1
    %p35 = por %p33, %p34
    %p36 = scmp.ne.s32.totalorder %s25, %s26
    %p37 = scmp.eq.s32.totalorder %s17, 0
    %p38 = por %p36, %p37
    %p39 = scmp.ne.s32.totalorder %s25, %s26
    %p40 = scmp.eq.s32.totalorder %s18, 1
    %p41 = por %p39, %p40
    %p43 = scmp.ne.s32.totalorder %s26, %s42
    %p44 = scmp.eq.s32.totalorder %s18, 0
    %p45 = por %p43, %p44
    %s47 = sadd.s32 %s46, 1
    %p50 = scmp.eq.s32.totalorder %s12, 1
    %p51 = scmp.ne.s32.totalorder %s46, %s48
    %p52 = scmp.eq.s32.totalorder %s12, 0
    %p53 = por %p51, %p52
    %p54 = scmp.ne.s32.totalorder %s46, %s48
    %p55 = scmp.eq.s32.totalorder %s17, 1
    %p56 = por %p54, %p55
    %p57 = scmp.ne.s32.totalorder %s48, %s49
    %p58 = scmp.eq.s32.totalorder %s17, 0
    %p59 = por %p57, %p58
    %p60 = scmp.ne.s32.totalorder %s48, %s49
    %p61 = scmp.eq.s32.totalorder %s18, 1
    %p62 = por %p60, %p61
    %p64 = scmp.ne.s32.totalorder %s49, %s63
    %p65 = scmp.eq.s32.totalorder %s18, 0
    %p66 = por %p64, %p65
    %s68 = sadd.s32 %s67, 1
    %p71 = scmp.eq.s32.totalorder %s12, 1
    %p72 = scmp.ne.s32.totalorder %s67, %s69
    %p73 = scmp.eq.s32.totalorder %s12, 0
    %p74 = por %p72, %p73
    %p75 = scmp.ne.s32.totalorder %s67, %s69
    %p76 = scmp.eq.s32.totalorder %s17, 1
    %p77 = por %p75, %p76
    %p78 = scmp.ne.s32.totalorder %s69, %s70
    %p79 = scmp.eq.s32.totalorder %s17, 0
    %p80 = por %p78, %p79
    %p81 = scmp.ne.s32.totalorder %s69, %s70
    %p82 = scmp.eq.s32.totalorder %s18, 1
    %p83 = por %p81, %p82
    %p85 = scmp.ne.s32.totalorder %s70, %s84
    %p86 = scmp.eq.s32.totalorder %s18, 0
    %p87 = por %p85, %p86
    %s89 = sadd.s32 %s88, 1
    %p92 = scmp.eq.s32.totalorder %s12, 1
    %p93 = scmp.ne.s32.totalorder %s88, %s90
    %p94 = scmp.eq.s32.totalorder %s12, 0
    %p95 = por %p93, %p94
    %p96 = scmp.ne.s32.totalorder %s88, %s90
    %p97 = scmp.eq.s32.totalorder %s17, 1
    %p98 = por %p96, %p97
    %p99 = scmp.ne.s32.totalorder %s90, %s91
    %p100 = scmp.eq.s32.totalorder %s17, 0
    %p101 = por %p99, %p100
    %p102 = scmp.ne.s32.totalorder %s90, %s91
    %p103 = scmp.eq.s32.totalorder %s18, 1
    %p104 = por %p102, %p103
    %p106 = scmp.ne.s32.totalorder %s91, %s105
    %p107 = scmp.eq.s32.totalorder %s18, 0
    %p108 = por %p106, %p107
    %s110 = sadd.s32 %s109, 1
    %p113 = scmp.eq.s32.totalorder %s12, 1
    %p114 = scmp.ne.s32.totalorder %s109, %s111
    %p115 = scmp.eq.s32.totalorder %s12, 0
    %p116 = por %p114, %p115
    %p117 = scmp.ne.s32.totalorder %s109, %s111
    %p118 = scmp.eq.s32.totalorder %s17, 1
    %p119 = por %p117, %p118
    %p120 = scmp.ne.s32.totalorder %s111, %s112
    %p121 = scmp.eq.s32.totalorder %s17, 0
    %p122 = por %p120, %p121
    %p123 = scmp.ne.s32.totalorder %s111, %s112
    %p124 = scmp.eq.s32.totalorder %s18, 1
    %p125 = por %p123, %p124
    %p127 = scmp.ne.s32.totalorder %s112, %s126
    %p128 = scmp.eq.s32.totalorder %s18, 0
    %p129 = por %p127, %p128
    %s131 = sadd.s32 %s130, 1
    %p134 = scmp.eq.s32.totalorder %s12, 1
    %p135 = scmp.ne.s32.totalorder %s130, %s132
    %p136 = scmp.eq.s32.totalorder %s12, 0
    %p137 = por %p135, %p136
    %p138 = scmp.ne.s32.totalorder %s130, %s132
    %p139 = scmp.eq.s32.totalorder %s17, 1
    %p140 = por %p138, %p139
    %p141 = scmp.ne.s32.totalorder %s132, %s133
    %p142 = scmp.eq.s32.totalorder %s17, 0
    %p143 = por %p141, %p142
    %p144 = scmp.ne.s32.totalorder %s132, %s133
    %p145 = scmp.eq.s32.totalorder %s18, 1
    %p146 = por %p144, %p145
    %p148 = scmp.ne.s32.totalorder %s133, %s147
    %p149 = scmp.eq.s32.totalorder %s18, 0
    %p150 = por %p148, %p149
    %s151 = ssub.s32 %s12, %s19
    %p152 = scmp.eq.s32.totalorder %s151, 0
    %s154 = sadd.s32 %s153, 1
    %s155 = scalar_select %p152, %s153, %s154
    %p158 = pneg %p152
    %p159 = scmp.eq.s32.totalorder %s12, 1
    %p160 = por %p158, %p159
    %p161 = scmp.ne.s32.totalorder %s153, %s156
    %p162 = scmp.eq.s32.totalorder %s12, 0
    %p163 = por %p161, %p162
    %p164 = scmp.ne.s32.totalorder %s153, %s156
    %p165 = scmp.eq.s32.totalorder %s17, 1
    %p166 = por %p164, %p165
    %p167 = scmp.ne.s32.totalorder %s156, %s157
    %p168 = scmp.eq.s32.totalorder %s17, 0
    %p169 = por %p167, %p168
    %p170 = scmp.ne.s32.totalorder %s156, %s157
    %p171 = scmp.eq.s32.totalorder %s18, 1
    %p172 = por %p170, %p171
    %p174 = scmp.ne.s32.totalorder %s157, %s173
    %p175 = scmp.eq.s32.totalorder %s18, 0
    %p176 = por %p174, %p175
    %p177 = scmp.le.s32.totalorder 1, %s12
    %p178 = scmp.lt.s32.totalorder %s12, 3
    %p179 = pnand %p177, %p178
    %p180 = pneg %p179
    // Predicated region
    $region9: #{tpu_custom_call.1} parent=5 // pred_check
      _
    $region10: #{tpu_custom_call.1} parent=5 // pred_check_branch
      %182 = sbr.rel (%p179) target = $region12
    $region11: #{tpu_custom_call.1} parent=5 // pred_region
      %s183 = ssub.s32 %s12, 1
      // Predicated region
      $region13: #{tpu_custom_call.1} parent=11 // pred_check
        %p184 = pneg %p59
      $region14: #{tpu_custom_call.1} parent=11 // pred_check_branch
        %186 = sbr.rel (%p184) target = $region16
      $region15: #{tpu_custom_call.1} parent=11 // pred_region
        _
      $region16: #{tpu_custom_call.1} parent=11 // pred_fallthru
        _
      // Predicated region
      $region17: #{tpu_custom_call.1} parent=11 // pred_check
        %p187 = pneg %p80
      $region18: #{tpu_custom_call.1} parent=11 // pred_check_branch
        %189 = sbr.rel (%p187) target = $region20
      $region19: #{tpu_custom_call.1} parent=11 // pred_region
        _
      $region20: #{tpu_custom_call.1} parent=11 // pred_fallthru
        _
      // Predicated region
      $region21: #{tpu_custom_call.1} parent=11 // pred_check
        %p190 = pneg %p101
      $region22: #{tpu_custom_call.1} parent=11 // pred_check_branch
        %192 = sbr.rel (%p190) target = $region24
      $region23: #{tpu_custom_call.1} parent=11 // pred_region
        _
      $region24: #{tpu_custom_call.1} parent=11 // pred_fallthru
        _
      // Predicated region
      $region25: #{tpu_custom_call.1} parent=11 // pred_check
        %p193 = pneg %p122
      $region26: #{tpu_custom_call.1} parent=11 // pred_check_branch
        %195 = sbr.rel (%p193) target = $region28
      $region27: #{tpu_custom_call.1} parent=11 // pred_region
        _
      $region28: #{tpu_custom_call.1} parent=11 // pred_fallthru
        _
      // Predicated region
      $region29: #{tpu_custom_call.1} parent=11 // pred_check
        %p196 = pneg %p143
      $region30: #{tpu_custom_call.1} parent=11 // pred_check_branch
        %198 = sbr.rel (%p196) target = $region32
      $region31: #{tpu_custom_call.1} parent=11 // pred_region
        _
      $region32: #{tpu_custom_call.1} parent=11 // pred_fallthru
        _
    $region12: #{tpu_custom_call.1} parent=5 // pred_fallthru
      _
    %p199 = scmp.lt.s32.totalorder %s12, 2
    // Predicated region
    $region33: #{tpu_custom_call.1} parent=5 // pred_check
      %p200 = pneg %p199
    $region34: #{tpu_custom_call.1} parent=5 // pred_check_branch
      %202 = sbr.rel (%p200) target = $region36
    $region35: #{tpu_custom_call.1} parent=5 // pred_region
      // Predicated region
      $region37: #{tpu_custom_call.1} parent=35 // pred_check
        %p203 = pneg %p32
      $region38: #{tpu_custom_call.1} parent=35 // pred_check_branch
        %205 = sbr.rel (%p203) target = $region40
      $region39: #{tpu_custom_call.1} parent=35 // pred_region
        %p206 = scmp.lt.s32.totalorder %s12, 1
        %s207 = scalar_select %p206, %s12, 1
        %s208 = smul.addr %s207, 8
        %s209 = smul.addr %s208, 8
        %s210 = scalar_lea.vmem %s0, %s209
      $region40: #{tpu_custom_call.1} parent=35 // pred_fallthru
        _
    $region36: #{tpu_custom_call.1} parent=5 // pred_fallthru
      _
    %p211 = scmp.le.s32.totalorder 1, %s12
    %p212 = scmp.lt.s32.totalorder %s12, 3
    %p213 = pnand %p211, %p212
    %p214 = pneg %p213
    // Predicated region
    $region41: #{tpu_custom_call.1} parent=5 // pred_check
      _
    $region42: #{tpu_custom_call.1} parent=5 // pred_check_branch
      %216 = sbr.rel (%p213) target = $region44
    $region43: #{tpu_custom_call.1} parent=5 // pred_region
      %s217 = ssub.s32 %s12, 1
      %p218 = scmp.lt.s32.totalorder %s17, 1
      %s219 = scalar_select %p218, %s17, 1
      %s220 = smul.addr %s219, 8
      %s221 = smul.addr %s220, 8
      %s222 = scalar_lea.vmem %s0, %s221
      %p223 = pneg %p38
      %p224 = pneg %p35
      %p225 = pneg %p59
      %p226 = pneg %p56
      %p227 = pneg %p80
      %p228 = pneg %p77
      %p229 = pneg %p101
      %p230 = pneg %p98
      %p231 = pneg %p122
      %p232 = pneg %p119
      %p233 = pneg %p143
      %p234 = pneg %p140
      %p235 = pneg %p169
      %p236 = pneg %p166
      %p237 = scmp.lt.s32.totalorder %s17, 1
      %s238 = scalar_select %p237, %s17, 1
      %s239 = smul.addr %s238, 8
      %s240 = smul.addr %s239, 8
      %s241 = scalar_lea.vmem %s6, %s240
      %p242 = scmp.lt.s32.totalorder %s17, 1
      %s243 = scalar_select %p242, %s17, 1
      %s244 = smul.addr %s243, 8
      %s245 = smul.addr %s244, 8
      %s246 = scalar_lea.vmem %s0, %s245
      %p247 = scmp.lt.s32.totalorder %s17, 1
      %s248 = scalar_select %p247, %s17, 1
      %s249 = smul.addr %s248, 8
      %s250 = smul.addr %s249, 8
      %s251 = scalar_lea.vmem %s6, %s250
      %v252 = vld [vmem:[%s246] sm:$0xff]
      %v253 = vld [vmem:[%s246 + $0x8] sm:$0xff]
      %v254 = vld [vmem:[%s246 + $0x10] sm:$0xff]
      %v255 = vld [vmem:[%s246 + $0x18] sm:$0xff]
      %v256 = vld [vmem:[%s246 + $0x20] sm:$0xff]
      %v257 = vld [vmem:[%s246 + $0x28] sm:$0xff]
      %v258 = vld [vmem:[%s246 + $0x30] sm:$0xff]
      %v259 = vld [vmem:[%s246 + $0x38] sm:$0xff]
      %v260 = vld [vmem:[%s1] sm:$0xff]
      %v261 = vld [vmem:[%s1 + $0x8] sm:$0xff]
      %v262 = vld [vmem:[%s1 + $0x10] sm:$0xff]
      %v263 = vld [vmem:[%s1 + $0x18] sm:$0xff]
      %vm264 = vcmask 261120
      %v266 = vsel %vm264, %v252, 0
      %v269 = vsel %vm264, %v253, 0
      %v272 = vsel %vm264, %v254, 0
      %v275 = vsel %vm264, %v255, 0
      %v278 = vsel %vm264, %v256, 0
      %v281 = vsel %vm264, %v257, 0
      %v284 = vsel %vm264, %v258, 0
      %v287 = vsel %vm264, %v259, 0
      %289 = vmatpush.msra.mxu0 0.0
      %290 = vmatpush.msra.mxu0 0.0
      %291 = vmatpush.msra.mxu0 0.0
      %292 = vmatpush.msra.mxu0 0.0
      %293 = vmatpush.msra.mxu0 0.0
      %294 = vmatpush.msra.mxu0 0.0
      %295 = vmatpush.msra.mxu0 0.0
      %296 = vmatpush.msra.mxu0 0.0
      %297 = vmatpush.msra.mxu0 0.0
      %298 = vmatpush.msra.mxu0 0.0
      %299 = vmatpush.msra.mxu0 0.0
      %300 = vmatpush.msra.mxu0 0.0
      %301 = vmatpush.msra.mxu0 %v263
      %302 = vmatpush.msra.mxu0 %v262
      %303 = vmatpush.msra.mxu0 %v261
      %304 = vmatpush.msra.mxu0 %v260
      %305 = vmatmul.f32.gmra.mxu0 %v266
      %v306 = vpop.f32.mrf.mxu0
      %v307 = vadd.f32 0.0, %v306
      %308 = vmatmul.f32.gmra.mxu0 %v269
      %v309 = vpop.f32.mrf.mxu0
      %v310 = vadd.f32 0.0, %v309
      %311 = vmatmul.f32.gmra.mxu0 %v272
      %v312 = vpop.f32.mrf.mxu0
      %v313 = vadd.f32 0.0, %v312
      %314 = vmatmul.f32.gmra.mxu0 %v275
      %v315 = vpop.f32.mrf.mxu0
      %v316 = vadd.f32 0.0, %v315
      %317 = vmatmul.f32.gmra.mxu0 %v278
      %v318 = vpop.f32.mrf.mxu0
      %v319 = vadd.f32 0.0, %v318
      %320 = vmatmul.f32.gmra.mxu0 %v281
      %v321 = vpop.f32.mrf.mxu0
      %v322 = vadd.f32 0.0, %v321
      %323 = vmatmul.f32.gmra.mxu0 %v284
      %v324 = vpop.f32.mrf.mxu0
      %v325 = vadd.f32 0.0, %v324
      %326 = vmatmul.f32.gmra.mxu0 %v287
      %v327 = vpop.f32.mrf.mxu0
      %v328 = vadd.f32 0.0, %v327
      %329 = vdwg.mxu0
      %v330 = vsel %vm264, %v307, 0.0
      %v331 = vsel %vm264, %v310, 0.0
      %v332 = vadd.f32 %v330, %v331
      %v333 = vsel %vm264, %v313, 0.0
      %v334 = vadd.f32 %v332, %v333
      %v335 = vsel %vm264, %v316, 0.0
      %v336 = vadd.f32 %v334, %v335
      %v337 = vsel %vm264, %v319, 0.0
      %v338 = vadd.f32 %v336, %v337
      %v339 = vsel %vm264, %v322, 0.0
      %v340 = vadd.f32 %v338, %v339
      %v341 = vsel %vm264, %v325, 0.0
      %v342 = vadd.f32 %v340, %v341
      %v343 = vsel %vm264, %v328, 0.0
      %v344 = vadd.f32 %v342, %v343
      %v345 = vrot.slane %v344, 4
      %v346 = vadd.f32 %v344, %v345
      %v347 = vrot.slane %v346, 2
      %v348 = vadd.f32 %v346, %v347
      %v349 = vrot.slane %v348, 1
      %v350 = vadd.f32 %v348, %v349
      %v351 = vmul.f32 %v307, %v307
      %v352 = vmul.f32 %v310, %v310
      %v353 = vmul.f32 %v313, %v313
      %v354 = vmul.f32 %v316, %v316
      %v355 = vmul.f32 %v319, %v319
      %v356 = vmul.f32 %v322, %v322
      %v357 = vmul.f32 %v325, %v325
      %v358 = vmul.f32 %v328, %v328
      %v359 = vsel %vm264, %v351, 0.0
      %v360 = vsel %vm264, %v352, 0.0
      %v361 = vadd.f32 %v359, %v360
      %v362 = vsel %vm264, %v353, 0.0
      %v363 = vadd.f32 %v361, %v362
      %v364 = vsel %vm264, %v354, 0.0
      %v365 = vadd.f32 %v363, %v364
      %v366 = vsel %vm264, %v355, 0.0
      %v367 = vadd.f32 %v365, %v366
      %v368 = vsel %vm264, %v356, 0.0
      %v369 = vadd.f32 %v367, %v368
      %v370 = vsel %vm264, %v357, 0.0
      %v371 = vadd.f32 %v369, %v370
      %v372 = vsel %vm264, %v358, 0.0
      %v373 = vadd.f32 %v371, %v372
      %v374 = vrot.slane %v373, 4
      %v375 = vadd.f32 %v373, %v374
      %v376 = vrot.slane %v375, 2
      %v377 = vadd.f32 %v375, %v376
      %v378 = vrot.slane %v377, 1
      %v379 = vadd.f32 %v377, %v378
      %vm380 = vcmask 1040384
      %v381 = vsel %vm380, %v350, %v379
      %v382 = vld [vmem:[%s4] sm:$0xff]
      %v383 = vld [vmem:[%s4 + $0x8] sm:$0xff]
      %v384 = vld [vmem:[%s4 + $0x10] sm:$0xff]
      %v385 = vld [vmem:[%s4 + $0x18] sm:$0xff]
      %v387 = vsel %vm264, %v381, 0
      %389 = vmatpush.msra.mxu0 0.0
      %390 = vmatpush.msra.mxu0 0.0
      %391 = vmatpush.msra.mxu0 0.0
      %392 = vmatpush.msra.mxu0 0.0
      %393 = vmatpush.msra.mxu0 0.0
      %394 = vmatpush.msra.mxu0 0.0
      %395 = vmatpush.msra.mxu0 0.0
      %396 = vmatpush.msra.mxu0 0.0
      %397 = vmatpush.msra.mxu0 0.0
      %398 = vmatpush.msra.mxu0 0.0
      %399 = vmatpush.msra.mxu0 0.0
      %400 = vmatpush.msra.mxu0 0.0
      %401 = vmatpush.msra.mxu0 %v385
      %402 = vmatpush.msra.mxu0 %v384
      %403 = vmatpush.msra.mxu0 %v383
      %404 = vmatpush.msra.mxu0 %v382
      %405 = vmatmul.f32.gmra.mxu0 %v387
      %v406 = vpop.f32.mrf.mxu0
      %v407 = vadd.f32 0.0, %v406
      %408 = vdwg.mxu0
      %v409 = vrcp.pop 128.0
      %v410 = vmul.f32 128.0, %v409
      %v411 = vsub.f32 1.0, %v410
      %v412 = vmul.f32 %v409, %v411
      %v413 = vadd.f32 %v409, %v412
      %vm414 = vweird.f32 %v409
      %v415 = vsel %vm414, %v409, %v413
      %v416 = vmul.f32 %v407, %v415
      %v417 = vmul.f32 %v416, %v416
      %v419 = vrot.slane %v417, 7
      %v421 = vsub.f32 %v416, %v419
      %v422 = vmax.f32 %v421, 0.0
      %v423 = vsel %vm380, %v416, %v422
      %v424 = vld [vmem:[%s5] sm:$0xff]
      %v425 = vld [vmem:[%s5 + $0x8] sm:$0xff]
      %vm426 = vcmask 130048
      %v428 = vsel %vm426, %v423, 0
      %430 = vmatpush.msra.mxu0 0.0
      %431 = vmatpush.msra.mxu0 0.0
      %432 = vmatpush.msra.mxu0 0.0
      %433 = vmatpush.msra.mxu0 0.0
      %434 = vmatpush.msra.mxu0 0.0
      %435 = vmatpush.msra.mxu0 0.0
      %436 = vmatpush.msra.mxu0 0.0
      %437 = vmatpush.msra.mxu0 0.0
      %438 = vmatpush.msra.mxu0 0.0
      %439 = vmatpush.msra.mxu0 0.0
      %440 = vmatpush.msra.mxu0 0.0
      %441 = vmatpush.msra.mxu0 0.0
      %442 = vmatpush.msra.mxu0 0.0
      %443 = vmatpush.msra.mxu0 0.0
      %444 = vmatpush.msra.mxu0 %v425
      %445 = vmatpush.msra.mxu0 %v424
      %446 = vmatmul.f32.gmra.mxu0 %v428
      %v447 = vpop.f32.mrf.mxu0
      %v448 = vadd.f32 0.0, %v447
      %449 = vdwg.mxu0
      %v450 = vadd.f32 %v448, 1e-05
      %v451 = vrsqrt.pop %v450
      %v452 = vmul.f32 %v451, %v450
      %v453 = vmul.f32 %v452, %v451
      %v454 = vmul.f32 0.5, %v453
      %v455 = vsub.f32 1.5, %v454
      %v456 = vmul.f32 %v451, %v455
      %vm457 = vweird.f32 %v450
      %vm458 = vweird.f32 %v451
      %vm459 = vmor %vm457, %vm458
      %v460 = vsel %vm459, %v451, %v456
      %v461 = vld [vmem:[%s2] sm:$0x1]
      %v463 = vperm.slane %v461, 0
      %v465 = vmul.f32 %v460, %v463
      %v466 = vld [vmem:[%s3] sm:$0x1]
      %v468 = vrot.slane %v465, 1
      %v470 = vmul.f32 %v448, %v468
      %v471 = vsub.f32 %v466, %v470
      %v472 = vperm.slane %v465, 1
      %v473 = vmul.f32 %v307, %v472
      %v474 = vmul.f32 %v310, %v472
      %v475 = vmul.f32 %v313, %v472
      %v476 = vmul.f32 %v316, %v472
      %v477 = vmul.f32 %v319, %v472
      %v478 = vmul.f32 %v322, %v472
      %v479 = vmul.f32 %v325, %v472
      %v480 = vmul.f32 %v328, %v472
      %v482 = vperm.slane %v471, 0
      %v484 = vadd.f32 %v473, %v482
      %v485 = vadd.f32 %v474, %v482
      %v486 = vadd.f32 %v475, %v482
      %v487 = vadd.f32 %v476, %v482
      %v488 = vadd.f32 %v477, %v482
      %v489 = vadd.f32 %v478, %v482
      %v490 = vadd.f32 %v479, %v482
      %v491 = vadd.f32 %v480, %v482
      %492 = vst.msk [vmem:[%s251] sm:$0xff] %vm264, %v484
      %493 = vst.msk [vmem:[%s251 + $0x8] sm:$0xff] %vm264, %v485
      %494 = vst.msk [vmem:[%s251 + $0x10] sm:$0xff] %vm264, %v486
      %495 = vst.msk [vmem:[%s251 + $0x18] sm:$0xff] %vm264, %v487
      %496 = vst.msk [vmem:[%s251 + $0x20] sm:$0xff] %vm264, %v488
      %497 = vst.msk [vmem:[%s251 + $0x28] sm:$0xff] %vm264, %v489
      %498 = vst.msk [vmem:[%s251 + $0x30] sm:$0xff] %vm264, %v490
      %499 = vst.msk [vmem:[%s251 + $0x38] sm:$0xff] %vm264, %v491
      %p500 = scmp.lt.s32.totalorder %s17, 1
      %s501 = scalar_select %p500, %s17, 1
      %s502 = smul.addr %s501, 8
      %s503 = smul.addr %s502, 8
      %s504 = scalar_lea.vmem %s6, %s503
      // Predicated region
      $region45: #{tpu_custom_call.1} parent=43 // pred_check
        %p505 = pneg %p166
      $region46: #{tpu_custom_call.1} parent=43 // pred_check_branch
        %507 = sbr.rel (%p505) target = $region48
      $region47: #{tpu_custom_call.1} parent=43 // pred_region
        _
      $region48: #{tpu_custom_call.1} parent=43 // pred_fallthru
        _
    $region44: #{tpu_custom_call.1} parent=5 // pred_fallthru
      _
    %p508 = scmp.le.s32.totalorder 2, %s12
    // Predicated region
    $region49: #{tpu_custom_call.1} parent=5 // pred_check
      %p509 = pneg %p508
    $region50: #{tpu_custom_call.1} parent=5 // pred_check_branch
      %511 = sbr.rel (%p509) target = $region52
    $region51: #{tpu_custom_call.1} parent=5 // pred_region
      %s512 = ssub.s32 %s12, 2
      // Predicated region
      $region53: #{tpu_custom_call.1} parent=51 // pred_check
        %p513 = pneg %p172
      $region54: #{tpu_custom_call.1} parent=51 // pred_check_branch
        %515 = sbr.rel (%p513) target = $region56
      $region55: #{tpu_custom_call.1} parent=51 // pred_region
        %p516 = scmp.lt.s32.totalorder %s18, 1
        %s517 = scalar_select %p516, %s18, 1
        %s518 = smul.addr %s517, 8
        %s519 = smul.addr %s518, 8
        %s520 = scalar_lea.vmem %s6, %s519
      $region56: #{tpu_custom_call.1} parent=51 // pred_fallthru
        _
    $region52: #{tpu_custom_call.1} parent=5 // pred_fallthru
      _
  $region6: #{tpu_custom_call.1} parent=0 // loop_footer
    %s16 = sadd.s32 1, %s12
  $region7: #{tpu_custom_call.1} parent=0 // loop_footer_branch
    %11 = sbr.rel target = $region3
  $region8: #{tpu_custom_call.1} parent=0 // loop_exit
    _

</llo_original>
